<compile_context>
chip_gen: v7x
topology: tpu7x:2x2x1
jax: 0.10.0
libtpu: 0.0.40
codegen_flags: <defaults>
</compile_context>

<pallas_src>
import jax
import jax.numpy as jnp
from jax import lax
from jax.experimental import pallas as pl
from jax.experimental.pallas import tpu as pltpu

ALPHA = 0.3
T_FIXED = 16


def _vmem_capacity_bytes():
    try:
        return int(pltpu.get_tpu_info().vmem_capacity_bytes)
    except Exception:
        return 64 << 20  # conservative default (v7x-sized)


def _reduce_cl(v, op):
    """(C, T, L) -> (1, T, 1): reduce the channel axis first (VPU vreg ops),
    then one cross-lane XLU reduce on the (1, T, L) result."""
    v = op(v, axis=0, keepdims=True)
    return op(v, axis=2, keepdims=True)


# ---------------------------------------------------------------------------
# Path 1: whole per-batch slab resident (1 HBM read + 1 write per element).
# ---------------------------------------------------------------------------
def _weighting_single_kernel(x_ref, o_ref):
    xf = x_ref[0].astype(jnp.float32)            # (C, T, L); no-op cast for f32
    c, _, l = xf.shape
    n = float(c * l)                             # elements of one (b, t) slice
    inv_n = 1.0 / n

    # gt = mean over T (sublane reduce), hoisted once.
    gt = jnp.mean(xf, axis=1, keepdims=True)     # (C, 1, L)

    # First moments, then center (classic two-pass: no raw-moment cancellation).
    mean_s = _reduce_cl(xf, jnp.sum) * inv_n     # (1, T, 1)
    mean_g = _reduce_cl(gt, jnp.sum) * inv_n     # (1, 1, 1)
    xc = xf - mean_s                             # the only explicit slab temp
    gc = gt - mean_g                             # (C, 1, L)

    # cc: torch's std normalizations cancel inside r.
    aa = _reduce_cl(xc * xc, jnp.sum)            # (1, T, 1)
    bb = _reduce_cl(gc * gc, jnp.sum)            # (1, 1, 1)
    num = _reduce_cl(xc * gc, jnp.sum)           # (1, T, 1)
    cc = num * lax.rsqrt(aa * bb)

    # sim: (x-min)/(max-min)/sum == (x-min)/(sum - n*min); shift-invariant, so
    # the centered copy is reused.  (max-min)==0 -> inf/NaN, same as torch.
    sum_xc = _reduce_cl(xc, jnp.sum)
    min_xc = _reduce_cl(xc, jnp.min)
    sum_gc = _reduce_cl(gc, jnp.sum)
    min_gc = _reduce_cl(gc, jnp.min)
    inv_den_s = pl.reciprocal(sum_xc - n * min_xc, approx=False)
    inv_den_g = pl.reciprocal(sum_gc - n * min_gc, approx=False)
    gn = (gc - min_gc) * inv_den_g               # (C, 1, L), hoisted once
    sn = (xc - min_xc) * inv_den_s
    sim = _reduce_cl(jnp.minimum(sn, gn), jnp.sum)

    # function_F + function_G on tiny (1, T, 1) tensors.
    score = ALPHA * cc + (1.0 - ALPHA) * sim
    s = 1.0 - score
    s = s * pl.reciprocal(jnp.max(s, axis=1, keepdims=True), approx=False)
    w = jnp.exp(s)                               # (1, T, 1)

    # Re-read the input block for the store so the centered f32 copy is not
    # live through the final pass.
    o_ref[0] = (x_ref[0].astype(jnp.float32) * w).astype(o_ref.dtype)


def _weighting_single(x_r, vmem_limit):
    B, C, T, L = x_r.shape
    cost = pl.CostEstimate(
        flops=16 * B * C * T * L,
        transcendentals=4 * B * T,
        bytes_accessed=2 * x_r.size * x_r.dtype.itemsize)
    return pl.pallas_call(
        _weighting_single_kernel,
        out_shape=jax.ShapeDtypeStruct((B, C, T, L), x_r.dtype),
        grid_spec=pltpu.PrefetchScalarGridSpec(
            num_scalar_prefetch=0,
            grid=(B,),
            in_specs=[pl.BlockSpec((1, C, T, L), lambda b: (b, 0, 0, 0))],
            out_specs=pl.BlockSpec((1, C, T, L), lambda b: (b, 0, 0, 0)),
        ),
        compiler_params=pltpu.CompilerParams(
            dimension_semantics=("parallel",),
            vmem_limit_bytes=int(vmem_limit),
        ),
        input_output_aliases={0: 0},
        cost_estimate=cost,
    )(x_r)


# ---------------------------------------------------------------------------
# Path 2: tiled three-phase fallback (channel-tiled; 3 reads + 1 write of x).
# ---------------------------------------------------------------------------
def _stats_kernel(x_ref, sum_ref, mins_ref, ming_ref):
    """Kernel A: first-moment stats, accumulated across C tiles."""
    c = pl.program_id(1)
    xt = x_ref[0].astype(jnp.float32)            # (tC, T, L)
    gt = jnp.mean(xt, axis=1, keepdims=True)     # (tC, 1, L): gt is per-channel

    sum_s = _reduce_cl(xt, jnp.sum)              # (1, T, 1)
    min_s = _reduce_cl(xt, jnp.min)              # (1, T, 1)
    min_g = _reduce_cl(gt, jnp.min)              # (1, 1, 1)

    @pl.when(c == 0)
    def _():
        sum_ref[...] = sum_s
        mins_ref[...] = min_s
        ming_ref[...] = min_g

    @pl.when(c != 0)
    def _():
        sum_ref[...] = sum_ref[...] + sum_s
        mins_ref[...] = jnp.minimum(mins_ref[...], min_s)
        ming_ref[...] = jnp.minimum(ming_ref[...], min_g)


def _make_weights_kernel(n_total):
    """Kernel B: centered cc moments + sim, accumulated across C tiles; the
    last tile finalizes score -> w (function_F + function_G)."""
    n = float(n_total)
    inv_n = 1.0 / n
    inv_t = 1.0 / float(T_FIXED)

    def kernel(x_ref, sum_ref, mins_ref, ming_ref, w_ref,
               aa_ref, num_ref, sim_ref, bb_ref):
        c = pl.program_id(1)
        nc = pl.num_programs(1)
        xt = x_ref[0].astype(jnp.float32)        # (tC, T, L)
        gt = jnp.mean(xt, axis=1, keepdims=True)  # (tC, 1, L)

        sum_s = sum_ref[...]                     # (1, T, 1) full-(C,L) stats
        min_s = mins_ref[...]                    # (1, T, 1)
        min_g = ming_ref[...]                    # (1, 1, 1)
        sum_g = jnp.sum(sum_s, axis=1, keepdims=True) * inv_t   # (1, 1, 1)
        mean_s = sum_s * inv_n
        mean_g = sum_g * inv_n

        # centered second moments (two-pass -> numerically safe)
        xc = xt - mean_s
        gc = gt - mean_g
        aa_p = _reduce_cl(xc * xc, jnp.sum)      # (1, T, 1)
        num_p = _reduce_cl(xc * gc, jnp.sum)     # (1, T, 1)
        bb_p = _reduce_cl(gc * gc, jnp.sum)      # (1, 1, 1)

        # sim partial: (max-min) factors cancel against the /sum normalization
        inv_den_s = pl.reciprocal(sum_s - n * min_s, approx=False)
        inv_den_g = pl.reciprocal(sum_g - n * min_g, approx=False)
        sn = (xt - min_s) * inv_den_s
        gn = (gt - min_g) * inv_den_g
        sim_p = _reduce_cl(jnp.minimum(sn, gn), jnp.sum)   # (1, T, 1)

        @pl.when(c == 0)
        def _():
            aa_ref[...] = aa_p
            num_ref[...] = num_p
            sim_ref[...] = sim_p
            bb_ref[...] = bb_p

        @pl.when(c != 0)
        def _():
            aa_ref[...] = aa_ref[...] + aa_p
            num_ref[...] = num_ref[...] + num_p
            sim_ref[...] = sim_ref[...] + sim_p
            bb_ref[...] = bb_ref[...] + bb_p

        @pl.when(c == nc - 1)
        def _():
            cc = num_ref[...] * lax.rsqrt(aa_ref[...] * bb_ref[...])
            score = ALPHA * cc + (1.0 - ALPHA) * sim_ref[...]
            s = 1.0 - score
            s = s * pl.reciprocal(jnp.max(s, axis=1, keepdims=True), approx=False)
            w_ref[...] = jnp.exp(s)

    return kernel


def _reweight_kernel(x_ref, w_ref, o_ref):
    """Kernel C: broadcast re-weight (pure streaming, both grid axes parallel)."""
    w = w_ref[...]                               # (1, T, 1)
    o_ref[...] = (x_ref[...].astype(jnp.float32) * w).astype(o_ref.dtype)


def _pick_ctile(C, T, L, target_bytes=(4 << 20)):
    """Largest divisor of C whose f32 block stays under target_bytes."""
    best = 1
    for d in range(1, C + 1):
        if C % d == 0 and d * T * L * 4 <= target_bytes:
            best = d
    return best


def _weighting_tiled(x_r, usable, ctile=None):
    B, C, T, L = x_r.shape
    tC = ctile if ctile is not None else _pick_ctile(C, T, L)
    assert C % tC == 0
    nC = C // tC
    blk = tC * T * L * x_r.dtype.itemsize
    blk_f32 = tC * T * L * 4

    # double-buffered x block + headroom for f32 working/unfused temporaries
    need_stream = 2 * blk + 4 * blk_f32 + (4 << 20)
    need_rw = 4 * blk + 2 * blk_f32 + (4 << 20)
    if max(need_stream, need_rw) > usable:
        raise ValueError(
            "Weighting_Module: even a single-channel block does not fit VMEM")
    vmem_stream = int(min(max(need_stream, 32 << 20), usable))
    vmem_rw = int(min(max(need_rw, 32 << 20), usable))

    x_spec = pl.BlockSpec((1, tC, T, L), lambda b, c: (b, c, 0, 0))
    pt_spec = pl.BlockSpec((1, T, 1), lambda b, c: (b, 0, 0))   # per-t stats / w
    pb_spec = pl.BlockSpec((1, 1, 1), lambda b, c: (b, 0, 0))   # per-b stats

    # ---- kernel A: first-moment stats -------------------------------------
    sum_s, min_s, min_g = pl.pallas_call(
        _stats_kernel,
        out_shape=(jax.ShapeDtypeStruct((B, T, 1), jnp.float32),
                   jax.ShapeDtypeStruct((B, T, 1), jnp.float32),
                   jax.ShapeDtypeStruct((B, 1, 1), jnp.float32)),
        grid_spec=pltpu.PrefetchScalarGridSpec(
            num_scalar_prefetch=0, grid=(B, nC),
            in_specs=[x_spec],
            out_specs=(pt_spec, pt_spec, pb_spec)),
        compiler_params=pltpu.CompilerParams(
            dimension_semantics=("parallel", "arbitrary"),
            vmem_limit_bytes=vmem_stream),
        cost_estimate=pl.CostEstimate(
            flops=3 * B * C * T * L, transcendentals=0,
            bytes_accessed=x_r.size * x_r.dtype.itemsize),
    )(x_r)

    # ---- kernel B: cc + sim -> per-(b, t) weights --------------------------
    w = pl.pallas_call(
        _make_weights_kernel(C * L),
        out_shape=jax.ShapeDtypeStruct((B, T, 1), jnp.float32),
        grid_spec=pltpu.PrefetchScalarGridSpec(
            num_scalar_prefetch=0, grid=(B, nC),
            in_specs=[x_spec, pt_spec, pt_spec, pb_spec],
            out_specs=pt_spec,
            scratch_shapes=[pltpu.VMEM((1, T, 1), jnp.float32),
                            pltpu.VMEM((1, T, 1), jnp.float32),
                            pltpu.VMEM((1, T, 1), jnp.float32),
                            pltpu.VMEM((1, 1, 1), jnp.float32)]),
        compiler_params=pltpu.CompilerParams(
            dimension_semantics=("parallel", "arbitrary"),
            vmem_limit_bytes=vmem_stream),
        cost_estimate=pl.CostEstimate(
            flops=12 * B * C * T * L, transcendentals=4 * B * T,
            bytes_accessed=x_r.size * x_r.dtype.itemsize),
    )(x_r, sum_s, min_s, min_g)

    # ---- kernel C: re-weight (1 read + 1 write) ----------------------------
    out = pl.pallas_call(
        _reweight_kernel,
        out_shape=jax.ShapeDtypeStruct((B, C, T, L), x_r.dtype),
        grid_spec=pltpu.PrefetchScalarGridSpec(
            num_scalar_prefetch=0, grid=(B, nC),
            in_specs=[x_spec, pt_spec],
            out_specs=x_spec),
        compiler_params=pltpu.CompilerParams(
            dimension_semantics=("parallel", "parallel"),
            vmem_limit_bytes=vmem_rw),
        input_output_aliases={0: 0},
        cost_estimate=pl.CostEstimate(
            flops=B * C * T * L, transcendentals=0,
            bytes_accessed=2 * x_r.size * x_r.dtype.itemsize),
    )(x_r, w)
    return out


# ---------------------------------------------------------------------------
# Public wrapper
# ---------------------------------------------------------------------------
def weighting_module(x, *, force_tiled=False, ctile=None):
    """x: (B, C, T, H, W); T must be 16.  Returns x * w, same shape/dtype."""
    B, C, T, H, W = x.shape
    assert T == T_FIXED, "PyTorch forward hard-codes 16 temporal slices"
    L = H * W

    # Free reshape (no data movement): (B, C, T, H, W) -> (B, C, T, H*W).
    x_r = x.reshape(B, C, T, L)

    capacity = _vmem_capacity_bytes()            # 128 MiB v5e/v6e, 64 MiB v7x
    usable = int(capacity * 0.85)

    slab = C * T * L * x.dtype.itemsize
    slab_f32 = C * T * L * 4
    # 4 pipelined blocks + centered copy + unfused-temp headroom (+ cast copy
    # for sub-f32 inputs) + gt/gc/gn + fixed headroom.
    n_tmp = 3 + (0 if x.dtype == jnp.float32 else 1)
    need = 4 * slab + n_tmp * slab_f32 + 4 * C * L * 4 + (2 << 20)

    if force_tiled or need > usable:
        out = _weighting_tiled(x_r, usable, ctile=ctile)
    else:
        out = _weighting_single(x_r, min(max(need, 32 << 20), usable))
    return out.reshape(B, C, T, H, W)


# ---------------- pure-JAX reference (mirrors the torch code) ----------------
def _reference(x):
    B, C, T, H, W = x.shape
    gt = jnp.mean(x, axis=2)                               # (B, C, H, W)

    def per_slice(xs, g):                                  # xs, g: (C, H, W)
        a = xs - jnp.mean(xs)
        b = g - jnp.mean(g)
        r = jnp.sum(a * b) / jnp.sqrt(jnp.sum(a * a) * jnp.sum(b * b))
        sn = (xs - jnp.min(xs)) / (jnp.max(xs) - jnp.min(xs))
        sn = sn / jnp.sum(sn)
        gn = (g - jnp.min(g)) / (jnp.max(g) - jnp.min(g))
        gn = gn / jnp.sum(gn)
        t2 = jnp.sum(jnp.minimum(sn, gn))
        return ALPHA * r + (1.0 - ALPHA) * t2

    score = jnp.stack(
        [jnp.stack([per_slice(x[bb, :, tt], gt[bb]) for tt in range(T)])
         for bb in range(B)]
    )                                                      # (B, T)
    s = 1.0 - score
    s = s / jnp.max(s, axis=1, keepdims=True)
    w = jnp.exp(s)
    return x * w[:, None, :, None, None]


if __name__ == "__main__":
    B, C, T, H, W = 2, 4, 16, 8, 8
    key = jax.random.PRNGKey(0)
    x = jax.random.normal(key, (B, C, T, H, W), dtype=jnp.float32)

    ref = jax.block_until_ready(_reference(x))

    # fast path: whole per-batch slab resident
    out = jax.block_until_ready(weighting_module(x))
    assert out.shape == x.shape and out.dtype == x.dtype
    err = float(jnp.max(jnp.abs(out - ref)))
    assert jnp.allclose(out, ref, rtol=1e-4, atol=1e-4), err

    # tiled fallback path (forced, two channel tiles) must agree as well
    out_t = jax.block_until_ready(weighting_module(x, force_tiled=True, ctile=2))
    err_t = float(jnp.max(jnp.abs(out_t - ref)))
    assert jnp.allclose(out_t, ref, rtol=1e-4, atol=1e-4), err_t

    print("KERNEL_OK")
</pallas_src>

<mosaic_0001>
module attributes {stable_mosaic.version = 11 : i64} {
  func.func @_weighting_single_kernel(%arg0: i32, %arg1: memref<1x4x16x64xf32, #tpu.memory_space<vmem>>, %arg2: memref<1x4x16x64xf32, #tpu.memory_space<vmem>>) attributes {dimension_semantics = [#tpu.dimension_semantics<parallel>], iteration_bounds = array<i64: 2>, scalar_prefetch = 0 : i64, scratch_operands = 0 : i64, tpu.core_type = #tpu.core_type<tc>, window_params = [{transform_indices = @transform_0, window_bounds = array<i64: 1, 4, 16, 64>}, {transform_indices = @transform_1, window_bounds = array<i64: 1, 4, 16, 64>}]} {
    %c0 = arith.constant 0 : index
    %c0_0 = arith.constant 0 : index
    %c0_1 = arith.constant 0 : index
    %c0_2 = arith.constant 0 : index
    %0 = vector.load %arg1[%c0, %c0_0, %c0_1, %c0_2] : memref<1x4x16x64xf32, #tpu.memory_space<vmem>>, vector<1x4x16x64xf32>
    %1 = vector.shape_cast %0 : vector<1x4x16x64xf32> to vector<4x16x64xf32>
    %cst = arith.constant dense<0.000000e+00> : vector<4x64xf32>
    %2 = vector.multi_reduction <add>, %1, %cst [1] : vector<4x16x64xf32> to vector<4x64xf32>
    %3 = vector.shape_cast %2 : vector<4x64xf32> to vector<4x1x64xf32>
    %cst_3 = arith.constant 1.600000e+01 : f32
    %4 = vector.broadcast %cst_3 : f32 to vector<4x1x64xf32>
    %5 = arith.divf %3, %4 : vector<4x1x64xf32>
    %cst_4 = arith.constant dense<0.000000e+00> : vector<16x64xf32>
    %6 = vector.multi_reduction <add>, %1, %cst_4 [0] : vector<4x16x64xf32> to vector<16x64xf32>
    %7 = vector.shape_cast %6 : vector<16x64xf32> to vector<1x16x64xf32>
    %cst_5 = arith.constant dense<0.000000e+00> : vector<1x16xf32>
    %8 = vector.multi_reduction <add>, %7, %cst_5 [2] : vector<1x16x64xf32> to vector<1x16xf32>
    %9 = vector.shape_cast %8 : vector<1x16xf32> to vector<1x16x1xf32>
    %cst_6 = arith.constant 3.906250e-03 : f32
    %10 = vector.broadcast %cst_6 : f32 to vector<1x16x1xf32>
    %11 = arith.mulf %9, %10 : vector<1x16x1xf32>
    %cst_7 = arith.constant dense<0.000000e+00> : vector<1x64xf32>
    %12 = vector.multi_reduction <add>, %5, %cst_7 [0] : vector<4x1x64xf32> to vector<1x64xf32>
    %13 = vector.shape_cast %12 : vector<1x64xf32> to vector<1x1x64xf32>
    %cst_8 = arith.constant dense<0.000000e+00> : vector<1x1xf32>
    %14 = vector.multi_reduction <add>, %13, %cst_8 [2] : vector<1x1x64xf32> to vector<1x1xf32>
    %15 = vector.shape_cast %14 : vector<1x1xf32> to vector<1x1x1xf32>
    %cst_9 = arith.constant 3.906250e-03 : f32
    %16 = vector.broadcast %cst_9 : f32 to vector<1x1x1xf32>
    %17 = arith.mulf %15, %16 : vector<1x1x1xf32>
    %18 = vector.broadcast %11 : vector<1x16x1xf32> to vector<4x16x64xf32>
    %19 = arith.subf %1, %18 : vector<4x16x64xf32>
    %20 = vector.broadcast %17 : vector<1x1x1xf32> to vector<4x1x64xf32>
    %21 = arith.subf %5, %20 : vector<4x1x64xf32>
    %22 = arith.mulf %19, %19 : vector<4x16x64xf32>
    %cst_10 = arith.constant dense<0.000000e+00> : vector<16x64xf32>
    %23 = vector.multi_reduction <add>, %22, %cst_10 [0] : vector<4x16x64xf32> to vector<16x64xf32>
    %24 = vector.shape_cast %23 : vector<16x64xf32> to vector<1x16x64xf32>
    %cst_11 = arith.constant dense<0.000000e+00> : vector<1x16xf32>
    %25 = vector.multi_reduction <add>, %24, %cst_11 [2] : vector<1x16x64xf32> to vector<1x16xf32>
    %26 = vector.shape_cast %25 : vector<1x16xf32> to vector<1x16x1xf32>
    %27 = arith.mulf %21, %21 : vector<4x1x64xf32>
    %cst_12 = arith.constant dense<0.000000e+00> : vector<1x64xf32>
    %28 = vector.multi_reduction <add>, %27, %cst_12 [0] : vector<4x1x64xf32> to vector<1x64xf32>
    %29 = vector.shape_cast %28 : vector<1x64xf32> to vector<1x1x64xf32>
    %cst_13 = arith.constant dense<0.000000e+00> : vector<1x1xf32>
    %30 = vector.multi_reduction <add>, %29, %cst_13 [2] : vector<1x1x64xf32> to vector<1x1xf32>
    %31 = vector.shape_cast %30 : vector<1x1xf32> to vector<1x1x1xf32>
    %32 = vector.broadcast %21 : vector<4x1x64xf32> to vector<4x16x64xf32>
    %33 = arith.mulf %19, %32 : vector<4x16x64xf32>
    %cst_14 = arith.constant dense<0.000000e+00> : vector<16x64xf32>
    %34 = vector.multi_reduction <add>, %33, %cst_14 [0] : vector<4x16x64xf32> to vector<16x64xf32>
    %35 = vector.shape_cast %34 : vector<16x64xf32> to vector<1x16x64xf32>
    %cst_15 = arith.constant dense<0.000000e+00> : vector<1x16xf32>
    %36 = vector.multi_reduction <add>, %35, %cst_15 [2] : vector<1x16x64xf32> to vector<1x16xf32>
    %37 = vector.shape_cast %36 : vector<1x16xf32> to vector<1x16x1xf32>
    %38 = vector.broadcast %31 : vector<1x1x1xf32> to vector<1x16x1xf32>
    %39 = arith.mulf %26, %38 : vector<1x16x1xf32>
    %40 = math.rsqrt %39 : vector<1x16x1xf32>
    %41 = arith.mulf %37, %40 : vector<1x16x1xf32>
    %cst_16 = arith.constant dense<0.000000e+00> : vector<16x64xf32>
    %42 = vector.multi_reduction <add>, %19, %cst_16 [0] : vector<4x16x64xf32> to vector<16x64xf32>
    %43 = vector.shape_cast %42 : vector<16x64xf32> to vector<1x16x64xf32>
    %cst_17 = arith.constant dense<0.000000e+00> : vector<1x16xf32>
    %44 = vector.multi_reduction <add>, %43, %cst_17 [2] : vector<1x16x64xf32> to vector<1x16xf32>
    %45 = vector.shape_cast %44 : vector<1x16xf32> to vector<1x16x1xf32>
    %cst_18 = arith.constant dense<0x7F800000> : vector<16x64xf32>
    %46 = vector.multi_reduction <minimumf>, %19, %cst_18 [0] : vector<4x16x64xf32> to vector<16x64xf32>
    %47 = vector.shape_cast %46 : vector<16x64xf32> to vector<1x16x64xf32>
    %cst_19 = arith.constant dense<0x7F800000> : vector<1x16xf32>
    %48 = vector.multi_reduction <minimumf>, %47, %cst_19 [2] : vector<1x16x64xf32> to vector<1x16xf32>
    %49 = vector.shape_cast %48 : vector<1x16xf32> to vector<1x16x1xf32>
    %cst_20 = arith.constant dense<0.000000e+00> : vector<1x64xf32>
    %50 = vector.multi_reduction <add>, %21, %cst_20 [0] : vector<4x1x64xf32> to vector<1x64xf32>
    %51 = vector.shape_cast %50 : vector<1x64xf32> to vector<1x1x64xf32>
    %cst_21 = arith.constant dense<0.000000e+00> : vector<1x1xf32>
    %52 = vector.multi_reduction <add>, %51, %cst_21 [2] : vector<1x1x64xf32> to vector<1x1xf32>
    %53 = vector.shape_cast %52 : vector<1x1xf32> to vector<1x1x1xf32>
    %cst_22 = arith.constant dense<0x7F800000> : vector<1x64xf32>
    %54 = vector.multi_reduction <minimumf>, %21, %cst_22 [0] : vector<4x1x64xf32> to vector<1x64xf32>
    %55 = vector.shape_cast %54 : vector<1x64xf32> to vector<1x1x64xf32>
    %cst_23 = arith.constant dense<0x7F800000> : vector<1x1xf32>
    %56 = vector.multi_reduction <minimumf>, %55, %cst_23 [2] : vector<1x1x64xf32> to vector<1x1xf32>
    %57 = vector.shape_cast %56 : vector<1x1xf32> to vector<1x1x1xf32>
    %cst_24 = arith.constant 2.560000e+02 : f32
    %58 = vector.broadcast %cst_24 : f32 to vector<1x16x1xf32>
    %59 = arith.mulf %58, %49 : vector<1x16x1xf32>
    %60 = arith.subf %45, %59 : vector<1x16x1xf32>
    %61 = tpu.reciprocal %60 : vector<1x16x1xf32> -> vector<1x16x1xf32>
    %cst_25 = arith.constant 2.560000e+02 : f32
    %62 = vector.broadcast %cst_25 : f32 to vector<1x1x1xf32>
    %63 = arith.mulf %62, %57 : vector<1x1x1xf32>
    %64 = arith.subf %53, %63 : vector<1x1x1xf32>
    %65 = tpu.reciprocal %64 : vector<1x1x1xf32> -> vector<1x1x1xf32>
    %66 = vector.broadcast %57 : vector<1x1x1xf32> to vector<4x1x64xf32>
    %67 = arith.subf %21, %66 : vector<4x1x64xf32>
    %68 = vector.broadcast %65 : vector<1x1x1xf32> to vector<4x1x64xf32>
    %69 = arith.mulf %67, %68 : vector<4x1x64xf32>
    %70 = vector.broadcast %49 : vector<1x16x1xf32> to vector<4x16x64xf32>
    %71 = arith.subf %19, %70 : vector<4x16x64xf32>
    %72 = vector.broadcast %61 : vector<1x16x1xf32> to vector<4x16x64xf32>
    %73 = arith.mulf %71, %72 : vector<4x16x64xf32>
    %74 = vector.broadcast %69 : vector<4x1x64xf32> to vector<4x16x64xf32>
    %75 = arith.minimumf %73, %74 : vector<4x16x64xf32>
    %cst_26 = arith.constant dense<0.000000e+00> : vector<16x64xf32>
    %76 = vector.multi_reduction <add>, %75, %cst_26 [0] : vector<4x16x64xf32> to vector<16x64xf32>
    %77 = vector.shape_cast %76 : vector<16x64xf32> to vector<1x16x64xf32>
    %cst_27 = arith.constant dense<0.000000e+00> : vector<1x16xf32>
    %78 = vector.multi_reduction <add>, %77, %cst_27 [2] : vector<1x16x64xf32> to vector<1x16xf32>
    %79 = vector.shape_cast %78 : vector<1x16xf32> to vector<1x16x1xf32>
    %cst_28 = arith.constant 3.000000e-01 : f32
    %80 = vector.broadcast %cst_28 : f32 to vector<1x16x1xf32>
    %81 = arith.mulf %80, %41 : vector<1x16x1xf32>
    %cst_29 = arith.constant 0.699999988 : f32
    %82 = vector.broadcast %cst_29 : f32 to vector<1x16x1xf32>
    %83 = arith.mulf %82, %79 : vector<1x16x1xf32>
    %84 = arith.addf %81, %83 : vector<1x16x1xf32>
    %cst_30 = arith.constant 1.000000e+00 : f32
    %85 = vector.broadcast %cst_30 : f32 to vector<1x16x1xf32>
    %86 = arith.subf %85, %84 : vector<1x16x1xf32>
    %cst_31 = arith.constant dense<0xFF800000> : vector<1x1xf32>
    %87 = vector.multi_reduction <maximumf>, %86, %cst_31 [1] : vector<1x16x1xf32> to vector<1x1xf32>
    %88 = vector.shape_cast %87 : vector<1x1xf32> to vector<1x1x1xf32>
    %89 = tpu.reciprocal %88 : vector<1x1x1xf32> -> vector<1x1x1xf32>
    %90 = vector.broadcast %89 : vector<1x1x1xf32> to vector<1x16x1xf32>
    %91 = arith.mulf %86, %90 : vector<1x16x1xf32>
    %92 = math.exp %91 : vector<1x16x1xf32>
    %c0_32 = arith.constant 0 : index
    %c0_33 = arith.constant 0 : index
    %c0_34 = arith.constant 0 : index
    %c0_35 = arith.constant 0 : index
    %93 = vector.load %arg1[%c0_32, %c0_33, %c0_34, %c0_35] : memref<1x4x16x64xf32, #tpu.memory_space<vmem>>, vector<1x4x16x64xf32>
    %94 = vector.shape_cast %93 : vector<1x4x16x64xf32> to vector<4x16x64xf32>
    %95 = vector.broadcast %92 : vector<1x16x1xf32> to vector<4x16x64xf32>
    %96 = arith.mulf %94, %95 : vector<4x16x64xf32>
    %c0_36 = arith.constant 0 : index
    %c0_37 = arith.constant 0 : index
    %c0_38 = arith.constant 0 : index
    %c0_39 = arith.constant 0 : index
    %97 = vector.load %arg2[%c0_36, %c0_37, %c0_38, %c0_39] : memref<1x4x16x64xf32, #tpu.memory_space<vmem>>, vector<1x4x16x64xf32>
    %98 = vector.shape_cast %97 : vector<1x4x16x64xf32> to vector<4x16x64xf32>
    %99 = vector.shape_cast %96 : vector<4x16x64xf32> to vector<1x4x16x64xf32>
    tpu.vector_store %arg2[%c0_36, %c0_37, %c0_38, %c0_39], %99 {strides = array<i32>} : memref<1x4x16x64xf32, #tpu.memory_space<vmem>>, vector<1x4x16x64xf32>,
    return
  }
  func.func @transform_0(%arg0: i32) -> (i32, i32, i32, i32) {
    %c0_i32 = arith.constant 0 : i32
    %c0_i32_0 = arith.constant 0 : i32
    %c0_i32_1 = arith.constant 0 : i32
    %c0_i32_2 = arith.constant 0 : i32
    return %arg0, %c0_i32, %c0_i32_0, %c0_i32_1 : i32, i32, i32, i32
  }
  func.func @transform_1(%arg0: i32) -> (i32, i32, i32, i32) {
    %c0_i32 = arith.constant 0 : i32
    %c0_i32_0 = arith.constant 0 : i32
    %c0_i32_1 = arith.constant 0 : i32
    %c0_i32_2 = arith.constant 0 : i32
    return %arg0, %c0_i32, %c0_i32_0, %c0_i32_1 : i32, i32, i32, i32
  }
}

</mosaic_0001>

<llo_original>
// kernel: tpu_custom_call.1
$region0: #{tpu_custom_call.1}
  #allocation0 [shape = 'u32[]', space=smem, size = 0x4, offset = 0x4, fixed_abs, tag = 'smem constant byte address 0x4 - core index']
  #allocation1 [shape = 'u32[144,128]{1,0:T(1,128)}', space=vmem, size = 0x12000, scoped, tag = 'internal scratch']
  %s0 = inlined_call_operand.hbm [shape: f32[2,4,16,64], index: 0, kind: input, shape index: {}, may-alias: {0,1}]
  %s1 = inlined_call_operand.hbm [shape: f32[2,4,16,64], index: 1, kind: output, shape index: {}, may-alias: {0,1}]
  %s2 = sld [smem:[#allocation0]]
  $region41: #{tpu_custom_call.1} parent=0
    _
  %s4 = ssub.s32 1, %s2
  %s5 = scalar_select 0, %s4, %s2
  $region1: #{tpu_custom_call.1} parent=0
    #allocation2 [shape = 'u8[65536]{0}', space=vmem, size = 0x10000, scoped, tag = 'input window, operand 0']
    #allocation3 [shape = 's32[2]{0}', space=sflag, size = 0x8, scoped, tag = 'scoped memory for tpu_custom_call.1']
    #allocation4 [shape = 's32[2]{0}', space=sflag, size = 0x8, scoped, tag = 'scoped memory for tpu_custom_call.1']
    #allocation5 [shape = 'u8[65536]{0}', space=vmem, size = 0x10000, scoped, tag = 'output window, operand 0']
    %6 = vsyncpa [#allocation3], 0
    %s7 = scalar_lea.sflag [#allocation3], 1
    %8 = vsyncpa %s7, 0
    %9 = vsyncpa [#allocation4], 0
    %s10 = scalar_lea.sflag [#allocation4], 1
    %11 = vsyncpa %s10, 0
    loop: start=0, step=1, limit=4
    $region2: #{tpu_custom_call.1} parent=1 // loop_pre_header
      _
    $region3: #{tpu_custom_call.1} parent=1 // loop_header
      %s13 = sphi 0, %s17
      %p14 = scmp.ge.s32.totalorder %s13, 4
      %s23 = sphi 0, %s25
      %s26 = sphi 0, %s23
      %s27 = sphi 0, %s26
      %s43 = sphi 0, %s27
      %s49 = sphi 0, %s51
      %s52 = sphi 0, %s49
      %s53 = sphi 0, %s52
      %s69 = sphi 0, %s53
    $region4: #{tpu_custom_call.1} parent=1 // loop_header_branch
      %16 = sbr.rel (%p14) target = $region8
    $region5: #{tpu_custom_call.1} parent=1 // loop_body
      %s18 = ssub.s32 %s13, 1
      %s19 = ssub.s32 %s13, 2
      %s20 = sadd.s32 %s13, 1
      %s21 = ssub.s32 %s13, %s20
      %p22 = scmp.eq.s32.totalorder %s21, 0
      %s24 = sadd.s32 %s23, 1
      %s25 = scalar_select %p22, %s23, %s24
      %p28 = pneg %p22
      %p29 = scmp.eq.s32.totalorder %s13, 1
      %p30 = por %p28, %p29
      %p31 = scmp.ne.s32.totalorder %s23, %s26
      %p32 = scmp.eq.s32.totalorder %s13, 0
      %p33 = por %p31, %p32
      %p34 = scmp.ne.s32.totalorder %s23, %s26
      %p35 = scmp.eq.s32.totalorder %s18, 1
      %p36 = por %p34, %p35
      %p37 = scmp.ne.s32.totalorder %s26, %s27
      %p38 = scmp.eq.s32.totalorder %s18, 0
      %p39 = por %p37, %p38
      %p40 = scmp.ne.s32.totalorder %s26, %s27
      %p41 = scmp.eq.s32.totalorder %s19, 1
      %p42 = por %p40, %p41
      %p44 = scmp.ne.s32.totalorder %s27, %s43
      %p45 = scmp.eq.s32.totalorder %s19, 0
      %p46 = por %p44, %p45
      %s47 = ssub.s32 %s13, %s20
      %p48 = scmp.eq.s32.totalorder %s47, 0
      %s50 = sadd.s32 %s49, 1
      %s51 = scalar_select %p48, %s49, %s50
      %p54 = pneg %p48
      %p55 = scmp.eq.s32.totalorder %s13, 1
      %p56 = por %p54, %p55
      %p57 = scmp.ne.s32.totalorder %s49, %s52
      %p58 = scmp.eq.s32.totalorder %s13, 0
      %p59 = por %p57, %p58
      %p60 = scmp.ne.s32.totalorder %s49, %s52
      %p61 = scmp.eq.s32.totalorder %s18, 1
      %p62 = por %p60, %p61
      %p63 = scmp.ne.s32.totalorder %s52, %s53
      %p64 = scmp.eq.s32.totalorder %s18, 0
      %p65 = por %p63, %p64
      %p66 = scmp.ne.s32.totalorder %s52, %s53
      %p67 = scmp.eq.s32.totalorder %s19, 1
      %p68 = por %p66, %p67
      %p70 = scmp.ne.s32.totalorder %s53, %s69
      %p71 = scmp.eq.s32.totalorder %s19, 0
      %p72 = por %p70, %p71
      %p73 = scmp.le.s32.totalorder 1, %s13
      %p74 = scmp.lt.s32.totalorder %s13, 3
      %p75 = pnand %p73, %p74
      %p76 = pneg %p75
      // Predicated region
      $region9: #{tpu_custom_call.1} parent=5 // pred_check
        _
      $region10: #{tpu_custom_call.1} parent=5 // pred_check_branch
        %78 = sbr.rel (%p75) target = $region12
      $region11: #{tpu_custom_call.1} parent=5 // pred_region
        %s79 = ssub.s32 %s13, 1
      $region12: #{tpu_custom_call.1} parent=5 // pred_fallthru
        _
      %p80 = scmp.lt.s32.totalorder %s13, 2
      // Predicated region
      $region13: #{tpu_custom_call.1} parent=5 // pred_check
        %p81 = pneg %p80
      $region14: #{tpu_custom_call.1} parent=5 // pred_check_branch
        %83 = sbr.rel (%p81) target = $region16
      $region15: #{tpu_custom_call.1} parent=5 // pred_region
        // Predicated region
        $region17: #{tpu_custom_call.1} parent=15 // pred_check
          %p84 = pneg %p33
        $region18: #{tpu_custom_call.1} parent=15 // pred_check_branch
          %86 = sbr.rel (%p84) target = $region20
        $region19: #{tpu_custom_call.1} parent=15 // pred_region
          %s87 = sand.u32 %s23, 1
          %s88 = scalar_lea.sflag [#allocation3], %s87
          %s89 = sand.u32 %s23, 1
          %s90 = smul.addr %s89, 64
          %s91 = scalar_lea.vmem [#allocation2], %s90
          %s93 = ssub.s32 1024, 1024
          %94 = vsyncadd %s88, %s93
          %s95 = smul.addr %s13, 8
          %s96 = smul.addr %s95, 128
          %s97 = scalar_lea.hbm %s0, %s96
          %s98 = sshll.u32 %s91, 4
          %s99 = int_to_ptr.vmem [resolvable:$true] %s98
          %104 = dma.hbm_to_vmem [thread:$0]  %s97, 1024, %s99, %s88, 128, 128, 8
        $region20: #{tpu_custom_call.1} parent=15 // pred_fallthru
          _
      $region16: #{tpu_custom_call.1} parent=5 // pred_fallthru
        _
      %p105 = scmp.le.s32.totalorder 1, %s13
      %p106 = scmp.lt.s32.totalorder %s13, 3
      %p107 = pnand %p105, %p106
      %p108 = pneg %p107
      // Predicated region
      $region21: #{tpu_custom_call.1} parent=5 // pred_check
        _
      $region22: #{tpu_custom_call.1} parent=5 // pred_check_branch
        %110 = sbr.rel (%p107) target = $region24
      $region23: #{tpu_custom_call.1} parent=5 // pred_region
        %s111 = ssub.s32 %s13, 1
        %s112 = sand.u32 %s26, 1
        %s113 = scalar_lea.sflag [#allocation3], %s112
        %s114 = sand.u32 %s26, 1
        %s115 = smul.addr %s114, 64
        %s116 = scalar_lea.vmem [#allocation2], %s115
        // Predicated region
        $region25: #{tpu_custom_call.1} parent=23 // pred_check
          %p117 = pneg %p39
        $region26: #{tpu_custom_call.1} parent=23 // pred_check_branch
          %119 = sbr.rel (%p117) target = $region28
        $region27: #{tpu_custom_call.1} parent=23 // pred_region
          %120 = dma.done %s113, 1024
        $region28: #{tpu_custom_call.1} parent=23 // pred_fallthru
          _
        %s121 = sand.u32 %s26, 1
        %s122 = scalar_lea.sflag [#allocation3], %s121
        %s123 = sand.u32 %s26, 1
        %s124 = smul.addr %s123, 64
        %s125 = scalar_lea.vmem [#allocation2], %s124
        %p126 = pneg %p39
        %p127 = pneg %p36
        %p128 = pneg %p65
        %p129 = pneg %p62
        %s130 = sand.u32 %s52, 1
        %s131 = scalar_lea.sflag [#allocation4], %s130
        %s132 = sand.u32 %s52, 1
        %s133 = smul.addr %s132, 64
        %s134 = scalar_lea.vmem [#allocation5], %s133
        %v135 = vld [vmem:[%s116] sm:$0xff]
        %v136 = vld [vmem:[%s116 + $0x8] sm:$0xff]
        %v137 = vld [vmem:[%s116 + $0x10] sm:$0xff]
        %v138 = vld [vmem:[%s116 + $0x18] sm:$0xff]
        %v139 = vld [vmem:[%s116 + $0x20] sm:$0xff]
        %v140 = vld [vmem:[%s116 + $0x28] sm:$0xff]
        %v141 = vld [vmem:[%s116 + $0x30] sm:$0xff]
        %v142 = vld [vmem:[%s116 + $0x38] sm:$0xff]
        %vm143 = vcmask 523264
        %v144 = vsel %vm143, %v135, 0.0
        %v145 = vsel %vm143, %v136, 0.0
        %v146 = vadd.f32 %v144, %v145
        %v147 = vrot.slane %v146, 4
        %v148 = vadd.f32 %v146, %v147
        %v149 = vrot.slane %v148, 2
        %v150 = vadd.f32 %v148, %v149
        %v151 = vrot.slane %v150, 1
        %v152 = vadd.f32 %v150, %v151
        %v153 = vsel %vm143, %v137, 0.0
        %v154 = vsel %vm143, %v138, 0.0
        %v155 = vadd.f32 %v153, %v154
        %v156 = vrot.slane %v155, 4
        %v157 = vadd.f32 %v155, %v156
        %v158 = vrot.slane %v157, 2
        %v159 = vadd.f32 %v157, %v158
        %v160 = vrot.slane %v159, 1
        %v161 = vadd.f32 %v159, %v160
        %v162 = vsel %vm143, %v139, 0.0
        %v163 = vsel %vm143, %v140, 0.0
        %v164 = vadd.f32 %v162, %v163
        %v165 = vrot.slane %v164, 4
        %v166 = vadd.f32 %v164, %v165
        %v167 = vrot.slane %v166, 2
        %v168 = vadd.f32 %v166, %v167
        %v169 = vrot.slane %v168, 1
        %v170 = vadd.f32 %v168, %v169
        %v171 = vsel %vm143, %v141, 0.0
        %v172 = vsel %vm143, %v142, 0.0
        %v173 = vadd.f32 %v171, %v172
        %v174 = vrot.slane %v173, 4
        %v175 = vadd.f32 %v173, %v174
        %v176 = vrot.slane %v175, 2
        %v177 = vadd.f32 %v175, %v176
        %v178 = vrot.slane %v177, 1
        %v179 = vadd.f32 %v177, %v178
        %v180 = vrcp.pop 16.0
        %v181 = vmul.f32 %v152, %v180
        %v182 = vmul.f32 %v161, %v180
        %v183 = vmul.f32 %v170, %v180
        %v184 = vmul.f32 %v179, %v180
        %v185 = vadd.f32 %v144, %v153
        %v186 = vadd.f32 %v185, %v162
        %v187 = vadd.f32 %v186, %v171
        %v188 = vadd.f32 %v145, %v154
        %v189 = vadd.f32 %v188, %v163
        %v190 = vadd.f32 %v189, %v172
        %v191 = vsel %vm143, %v187, 0.0
        %192 = vadd.xlane.f32.xlu0 %v191
        %v193 = vpop.xlane.xlu0 %192
        %v194 = vsel %vm143, %v190, 0.0
        %195 = vadd.xlane.f32.xlu0 %v194
        %v196 = vpop.xlane.xlu0 %195
        %v197 = vmul.f32 %v193, 0.00390625
        %v198 = vmul.f32 %v196, 0.00390625
        %v199 = vsel %vm143, %v181, 0.0
        %v200 = vsel %vm143, %v182, 0.0
        %v201 = vadd.f32 %v199, %v200
        %v202 = vsel %vm143, %v183, 0.0
        %v203 = vadd.f32 %v201, %v202
        %v204 = vsel %vm143, %v184, 0.0
        %v205 = vadd.f32 %v203, %v204
        %v206 = vsel %vm143, %v205, 0.0
        %207 = vadd.xlane.f32.xlu0 %v206
        %v208 = vpop.xlane.xlu0 %207
        %v209 = vmul.f32 %v208, 0.00390625
        %v210 = vsub.f32 %v135, %v197
        %v211 = vsub.f32 %v136, %v198
        %v212 = vsub.f32 %v137, %v197
        %v213 = vsub.f32 %v138, %v198
        %v214 = vsub.f32 %v139, %v197
        %v215 = vsub.f32 %v140, %v198
        %v216 = vsub.f32 %v141, %v197
        %v217 = vsub.f32 %v142, %v198
        %v218 = vsub.f32 %v181, %v209
        %v219 = vsub.f32 %v182, %v209
        %v220 = vsub.f32 %v183, %v209
        %v221 = vsub.f32 %v184, %v209
        %v222 = vmul.f32 %v210, %v210
        %v223 = vmul.f32 %v211, %v211
        %v224 = vmul.f32 %v212, %v212
        %v225 = vmul.f32 %v213, %v213
        %v226 = vmul.f32 %v214, %v214
        %v227 = vmul.f32 %v215, %v215
        %v228 = vmul.f32 %v216, %v216
        %v229 = vmul.f32 %v217, %v217
        %v230 = vsel %vm143, %v222, 0.0
        %v231 = vsel %vm143, %v224, 0.0
        %v232 = vadd.f32 %v230, %v231
        %v233 = vsel %vm143, %v226, 0.0
        %v234 = vadd.f32 %v232, %v233
        %v235 = vsel %vm143, %v228, 0.0
        %v236 = vadd.f32 %v234, %v235
        %v237 = vsel %vm143, %v223, 0.0
        %v238 = vsel %vm143, %v225, 0.0
        %v239 = vadd.f32 %v237, %v238
        %v240 = vsel %vm143, %v227, 0.0
        %v241 = vadd.f32 %v239, %v240
        %v242 = vsel %vm143, %v229, 0.0
        %v243 = vadd.f32 %v241, %v242
        %v244 = vsel %vm143, %v236, 0.0
        %245 = vadd.xlane.f32.xlu0 %v244
        %v246 = vpop.xlane.xlu0 %245
        %v247 = vsel %vm143, %v243, 0.0
        %248 = vadd.xlane.f32.xlu0 %v247
        %v249 = vpop.xlane.xlu0 %248
        %v250 = vmul.f32 %v218, %v218
        %v251 = vmul.f32 %v219, %v219
        %v252 = vmul.f32 %v220, %v220
        %v253 = vmul.f32 %v221, %v221
        %v254 = vsel %vm143, %v250, 0.0
        %v255 = vsel %vm143, %v251, 0.0
        %v256 = vadd.f32 %v254, %v255
        %v257 = vsel %vm143, %v252, 0.0
        %v258 = vadd.f32 %v256, %v257
        %v259 = vsel %vm143, %v253, 0.0
        %v260 = vadd.f32 %v258, %v259
        %v261 = vsel %vm143, %v260, 0.0
        %262 = vadd.xlane.f32.xlu0 %v261
        %v263 = vpop.xlane.xlu0 %262
        %v264 = vmul.f32 %v210, %v218
        %v265 = vmul.f32 %v211, %v218
        %v266 = vmul.f32 %v212, %v219
        %v267 = vmul.f32 %v213, %v219
        %v268 = vmul.f32 %v214, %v220
        %v269 = vmul.f32 %v215, %v220
        %v270 = vmul.f32 %v216, %v221
        %v271 = vmul.f32 %v217, %v221
        %v272 = vsel %vm143, %v264, 0.0
        %v273 = vsel %vm143, %v266, 0.0
        %v274 = vadd.f32 %v272, %v273
        %v275 = vsel %vm143, %v268, 0.0
        %v276 = vadd.f32 %v274, %v275
        %v277 = vsel %vm143, %v270, 0.0
        %v278 = vadd.f32 %v276, %v277
        %v279 = vsel %vm143, %v265, 0.0
        %v280 = vsel %vm143, %v267, 0.0
        %v281 = vadd.f32 %v279, %v280
        %v282 = vsel %vm143, %v269, 0.0
        %v283 = vadd.f32 %v281, %v282
        %v284 = vsel %vm143, %v271, 0.0
        %v285 = vadd.f32 %v283, %v284
        %v286 = vsel %vm143, %v278, 0.0
        %287 = vadd.xlane.f32.xlu0 %v286
        %v288 = vpop.xlane.xlu0 %287
        %v289 = vsel %vm143, %v285, 0.0
        %290 = vadd.xlane.f32.xlu0 %v289
        %v291 = vpop.xlane.xlu0 %290
        %v292 = vmul.f32 %v246, %v263
        %v293 = vmul.f32 %v249, %v263
        %v294 = vrsqrt.pop %v292
        %v295 = vrsqrt.pop %v293
        %v296 = vmul.f32 %v288, %v294
        %v297 = vmul.f32 %v291, %v295
        %v298 = vsel %vm143, %v210, 0.0
        %v299 = vsel %vm143, %v212, 0.0
        %v300 = vadd.f32 %v298, %v299
        %v301 = vsel %vm143, %v214, 0.0
        %v302 = vadd.f32 %v300, %v301
        %v303 = vsel %vm143, %v216, 0.0
        %v304 = vadd.f32 %v302, %v303
        %v305 = vsel %vm143, %v211, 0.0
        %v306 = vsel %vm143, %v213, 0.0
        %v307 = vadd.f32 %v305, %v306
        %v308 = vsel %vm143, %v215, 0.0
        %v309 = vadd.f32 %v307, %v308
        %v310 = vsel %vm143, %v217, 0.0
        %v311 = vadd.f32 %v309, %v310
        %v312 = vsel %vm143, %v304, 0.0
        %313 = vadd.xlane.f32.xlu0 %v312
        %v314 = vpop.xlane.xlu0 %313
        %v315 = vsel %vm143, %v311, 0.0
        %316 = vadd.xlane.f32.xlu0 %v315
        %v317 = vpop.xlane.xlu0 %316
        %v318 = vsel %vm143, %v210, inf
        %v319 = vsel %vm143, %v212, inf
        %v320 = vsel %vm143, %v214, inf
        %v321 = vmin.f32 %v318, %v320
        %v322 = vsel %vm143, %v216, inf
        %v323 = vmin.f32 %v319, %v322
        %v324 = vmin.f32 %v321, %v323
        %v325 = vsel %vm143, %v211, inf
        %v326 = vsel %vm143, %v213, inf
        %v327 = vsel %vm143, %v215, inf
        %v328 = vmin.f32 %v325, %v327
        %v329 = vsel %vm143, %v217, inf
        %v330 = vmin.f32 %v326, %v329
        %v331 = vmin.f32 %v328, %v330
        %v332 = vsel %vm143, %v324, inf
        %333 = vmin.xlane.f32.xlu0 %v332
        %v334 = vpop.xlane.xlu0 %333
        %v335 = vsel %vm143, %v331, inf
        %336 = vmin.xlane.f32.xlu0 %v335
        %v337 = vpop.xlane.xlu0 %336
        %v338 = vsel %vm143, %v218, 0.0
        %v339 = vsel %vm143, %v219, 0.0
        %v340 = vadd.f32 %v338, %v339
        %v341 = vsel %vm143, %v220, 0.0
        %v342 = vadd.f32 %v340, %v341
        %v343 = vsel %vm143, %v221, 0.0
        %v344 = vadd.f32 %v342, %v343
        %v345 = vsel %vm143, %v344, 0.0
        %346 = vadd.xlane.f32.xlu0 %v345
        %v347 = vpop.xlane.xlu0 %346
        %v348 = vsel %vm143, %v218, inf
        %v349 = vsel %vm143, %v219, inf
        %v350 = vsel %vm143, %v220, inf
        %v351 = vsel %vm143, %v221, inf
        %v352 = vmin.f32 %v348, %v349
        %v353 = vmin.f32 %v350, %v351
        %v354 = vmin.f32 %v352, %v353
        %v355 = vsel %vm143, %v354, inf
        %356 = vmin.xlane.f32.xlu0 %v355
        %v357 = vpop.xlane.xlu0 %356
        %v358 = vmul.f32 %v334, 256.0
        %v359 = vmul.f32 %v337, 256.0
        %v360 = vsub.f32 %v314, %v358
        %v361 = vsub.f32 %v317, %v359
        %v362 = vrcp.pop %v360
        %v363 = vrcp.pop %v361
        %v364 = vmul.f32 %v357, 256.0
        %v365 = vsub.f32 %v347, %v364
        %v366 = vrcp.pop %v365
        %v367 = vsub.f32 %v218, %v357
        %v368 = vsub.f32 %v219, %v357
        %v369 = vsub.f32 %v220, %v357
        %v370 = vsub.f32 %v221, %v357
        %v371 = vmul.f32 %v367, %v366
        %v372 = vmul.f32 %v368, %v366
        %v373 = vmul.f32 %v369, %v366
        %v374 = vmul.f32 %v370, %v366
        %v375 = vsub.f32 %v210, %v334
        %v376 = vsub.f32 %v211, %v337
        %v377 = vsub.f32 %v212, %v334
        %v378 = vsub.f32 %v213, %v337
        %v379 = vsub.f32 %v214, %v334
        %v380 = vsub.f32 %v215, %v337
        %v381 = vsub.f32 %v216, %v334
        %v382 = vsub.f32 %v217, %v337
        %v383 = vmul.f32 %v375, %v362
        %v384 = vmul.f32 %v376, %v363
        %v385 = vmul.f32 %v377, %v362
        %v386 = vmul.f32 %v378, %v363
        %v387 = vmul.f32 %v379, %v362
        %v388 = vmul.f32 %v380, %v363
        %v389 = vmul.f32 %v381, %v362
        %v390 = vmul.f32 %v382, %v363
        %v391 = vmin.f32 %v383, %v371
        %v392 = vmin.f32 %v384, %v371
        %v393 = vmin.f32 %v385, %v372
        %v394 = vmin.f32 %v386, %v372
        %v395 = vmin.f32 %v387, %v373
        %v396 = vmin.f32 %v388, %v373
        %v397 = vmin.f32 %v389, %v374
        %v398 = vmin.f32 %v390, %v374
        %v399 = vsel %vm143, %v391, 0.0
        %v400 = vsel %vm143, %v393, 0.0
        %v401 = vadd.f32 %v399, %v400
        %v402 = vsel %vm143, %v395, 0.0
        %v403 = vadd.f32 %v401, %v402
        %v404 = vsel %vm143, %v397, 0.0
        %v405 = vadd.f32 %v403, %v404
        %v406 = vsel %vm143, %v392, 0.0
        %v407 = vsel %vm143, %v394, 0.0
        %v408 = vadd.f32 %v406, %v407
        %v409 = vsel %vm143, %v396, 0.0
        %v410 = vadd.f32 %v408, %v409
        %v411 = vsel %vm143, %v398, 0.0
        %v412 = vadd.f32 %v410, %v411
        %v413 = vsel %vm143, %v405, 0.0
        %414 = vadd.xlane.f32.xlu0 %v413
        %v415 = vpop.xlane.xlu0 %414
        %v416 = vsel %vm143, %v412, 0.0
        %417 = vadd.xlane.f32.xlu0 %v416
        %v418 = vpop.xlane.xlu0 %417
        %v419 = vmul.f32 %v296, 0.3
        %v420 = vmul.f32 %v297, 0.3
        %v421 = vmul.f32 %v415, 0.7
        %v422 = vmul.f32 %v418, 0.7
        %v423 = vadd.f32 %v419, %v421
        %v424 = vadd.f32 %v420, %v422
        %v425 = vsub.f32 1.0, %v423
        %v426 = vsub.f32 1.0, %v424
        %v427 = vmax.f32 %v425, %v426
        %v428 = vrot.slane %v427, 4
        %v429 = vmax.f32 %v427, %v428
        %v430 = vrot.slane %v429, 2
        %v431 = vmax.f32 %v429, %v430
        %v432 = vrot.slane %v431, 1
        %v433 = vmax.f32 %v431, %v432
        %v434 = vrcp.pop %v433
        %v435 = vmul.f32 %v425, %v434
        %v436 = vmul.f32 %v426, %v434
        %v437 = vmul.f32 %v435, 1.442695
        %v438 = vpow.pop %v437
        %v439 = vmul.f32 %v436, 1.442695
        %v440 = vpow.pop %v439
        %v441 = vmul.f32 %v135, %v438
        %v442 = vmul.f32 %v136, %v440
        %v443 = vmul.f32 %v137, %v438
        %v444 = vmul.f32 %v138, %v440
        %v445 = vmul.f32 %v139, %v438
        %v446 = vmul.f32 %v140, %v440
        %v447 = vmul.f32 %v141, %v438
        %v448 = vmul.f32 %v142, %v440
        %449 = vst.msk [vmem:[%s134] sm:$0xff] %vm143, %v441
        %450 = vst.msk [vmem:[%s134 + $0x8] sm:$0xff] %vm143, %v442
        %451 = vst.msk [vmem:[%s134 + $0x10] sm:$0xff] %vm143, %v443
        %452 = vst.msk [vmem:[%s134 + $0x18] sm:$0xff] %vm143, %v444
        %453 = vst.msk [vmem:[%s134 + $0x20] sm:$0xff] %vm143, %v445
        %454 = vst.msk [vmem:[%s134 + $0x28] sm:$0xff] %vm143, %v446
        %455 = vst.msk [vmem:[%s134 + $0x30] sm:$0xff] %vm143, %v447
        %456 = vst.msk [vmem:[%s134 + $0x38] sm:$0xff] %vm143, %v448
        %s457 = sand.u32 %s52, 1
        %s458 = scalar_lea.sflag [#allocation4], %s457
        %s459 = sand.u32 %s52, 1
        %s460 = smul.addr %s459, 64
        %s461 = scalar_lea.vmem [#allocation5], %s460
        // Predicated region
        $region29: #{tpu_custom_call.1} parent=23 // pred_check
          %p462 = pneg %p62
        $region30: #{tpu_custom_call.1} parent=23 // pred_check_branch
          %464 = sbr.rel (%p462) target = $region32
        $region31: #{tpu_custom_call.1} parent=23 // pred_region
          %s466 = ssub.s32 1024, 1024
          %467 = vsyncadd %s458, %s466
          %s468 = smul.addr %s18, 8
          %s469 = smul.addr %s468, 128
          %s470 = scalar_lea.hbm %s1, %s469
          %s471 = sshll.u32 %s461, 4
          %s472 = int_to_ptr.vmem [resolvable:$true] %s471
          %477 = dma.vmem_to_hbm [thread:$0]  %s472, 1024, %s470, %s458, 128, 128, 8
        $region32: #{tpu_custom_call.1} parent=23 // pred_fallthru
          _
      $region24: #{tpu_custom_call.1} parent=5 // pred_fallthru
        _
      %p478 = scmp.le.s32.totalorder 2, %s13
      // Predicated region
      $region33: #{tpu_custom_call.1} parent=5 // pred_check
        %p479 = pneg %p478
      $region34: #{tpu_custom_call.1} parent=5 // pred_check_branch
        %481 = sbr.rel (%p479) target = $region36
      $region35: #{tpu_custom_call.1} parent=5 // pred_region
        %s482 = ssub.s32 %s13, 2
        // Predicated region
        $region37: #{tpu_custom_call.1} parent=35 // pred_check
          %p483 = pneg %p68
        $region38: #{tpu_custom_call.1} parent=35 // pred_check_branch
          %485 = sbr.rel (%p483) target = $region40
        $region39: #{tpu_custom_call.1} parent=35 // pred_region
          %s486 = sand.u32 %s53, 1
          %s487 = scalar_lea.sflag [#allocation4], %s486
          %s488 = sand.u32 %s53, 1
          %s489 = smul.addr %s488, 64
          %s490 = scalar_lea.vmem [#allocation5], %s489
          %491 = dma.done %s487, 1024
        $region40: #{tpu_custom_call.1} parent=35 // pred_fallthru
          _
      $region36: #{tpu_custom_call.1} parent=5 // pred_fallthru
        _
    $region6: #{tpu_custom_call.1} parent=1 // loop_footer
      %s17 = sadd.s32 1, %s13
    $region7: #{tpu_custom_call.1} parent=1 // loop_footer_branch
      %12 = sbr.rel target = $region3
    $region8: #{tpu_custom_call.1} parent=1 // loop_exit
      _
    %492 = vsyncpa [#allocation3], 1
    %s493 = scalar_lea.sflag [#allocation3], 1
    %494 = vsyncpa %s493, 1
    %495 = vsyncpa [#allocation4], 1
    %s496 = scalar_lea.sflag [#allocation4], 1
    %497 = vsyncpa %s496, 1

</llo_original>
